<compile_context>
chip_gen: v6e
topology: v6e:2x2x1
jax: 0.10.0
libtpu: 0.0.40
codegen_flags: <defaults>
</compile_context>

<pallas_src>
import functools

import jax
import jax.numpy as jnp
from jax.experimental import pallas as pl
from jax.experimental.pallas import tpu as pltpu

_LANE = 128  # vreg lane width


def _round_up(n, m):
    return ((n + m - 1) // m) * m


def _qnet_kernel(x_ref, w1_ref, b_ref, w2_ref, o_ref):
    """Fused MLP: o = relu(x @ W1 + b1) @ W2 + b2 (all lane-padded)."""
    hid_p = w1_ref.shape[1]
    out_p = w2_ref.shape[1]
    # hidden = relu(x @ W1 + b1)
    h = jnp.dot(x_ref[...], w1_ref[...], preferred_element_type=jnp.float32)
    h = jnp.maximum(h + b_ref[0:1, :hid_p], 0.0)
    # out = hidden @ W2 + b2 (output ref is already f32 -> no cast needed)
    o_ref[...] = (
        jnp.dot(h, w2_ref[...], preferred_element_type=jnp.float32)
        + b_ref[1:2, :out_p]
    )


def pack_params(w1, b1, w2, b2):
    """One-time prep: zero-pad weights to 128-lane widths, pack both biases.

    w1: (input, hidden)   b1: (hidden,)
    w2: (hidden, output)  b2: (output,)
    Returns (w1_pad, bias_pack, w2_pad, out_dim). Padding is zero so padded
    hidden lanes are relu(0 + 0) = 0 and padded output lanes are exactly 0.
    """
    in_dim, hidden = w1.shape
    hidden2, out_dim = w2.shape
    assert hidden == hidden2
    hid_p = _round_up(hidden, _LANE)
    out_p = _round_up(out_dim, _LANE)
    bias_w = max(hid_p, out_p)

    w1_p = jnp.zeros((in_dim, hid_p), jnp.float32).at[:, :hidden].set(w1)
    w2_p = jnp.zeros((hid_p, out_p), jnp.float32).at[:hidden, :out_dim].set(w2)
    bias = (
        jnp.zeros((2, bias_w), jnp.float32)
        .at[0, :hidden].set(b1)
        .at[1, :out_dim].set(b2)
    )
    return w1_p, bias, w2_p, out_dim


@functools.partial(jax.jit, static_argnames=("out_dim",))
def linear_qnet_forward(x, w1_pad, bias_pack, w2_pad, out_dim):
    """Fused forward pass. x: (B, input_size) f32 -> (B, out_dim) f32.

    Note: for throughput, batch many states per call (B >= 128) in the caller;
    one call at large B costs about the same wall time as one call at B=8.
    """
    B = x.shape[0]
    out_p = w2_pad.shape[1]
    vmem = pl.BlockSpec(memory_space=pltpu.MemorySpace.VMEM)

    y_pad = pl.pallas_call(
        _qnet_kernel,
        out_shape=jax.ShapeDtypeStruct((B, out_p), jnp.float32),
        in_specs=[vmem, vmem, vmem, vmem],
        out_specs=vmem,
    )(x, w1_pad, bias_pack, w2_pad)

    return y_pad[:, :out_dim]


def init_params(key, input_size, hidden_size, output_size):
    # Deterministic init mimicking torch.nn.Linear default (+/- 1/sqrt(fan_in)).
    k1, k2, k3, k4 = jax.random.split(key, 4)
    bound1 = 1.0 / jnp.sqrt(input_size)
    bound2 = 1.0 / jnp.sqrt(hidden_size)
    w1 = jax.random.uniform(k1, (input_size, hidden_size), jnp.float32, -bound1, bound1)
    b1 = jax.random.uniform(k2, (hidden_size,), jnp.float32, -bound1, bound1)
    w2 = jax.random.uniform(k3, (hidden_size, output_size), jnp.float32, -bound2, bound2)
    b2 = jax.random.uniform(k4, (output_size,), jnp.float32, -bound2, bound2)
    return w1, b1, w2, b2


if __name__ == "__main__":
    key = jax.random.PRNGKey(0)
    k_x, k_p = jax.random.split(key)

    # Small shapes consistent with the module: Linear_QNet(16, 32, 4), batch 8.
    B, input_size, hidden_size, output_size = 8, 16, 32, 4

    x = jax.random.normal(k_x, (B, input_size), jnp.float32)
    w1, b1, w2, b2 = init_params(k_p, input_size, hidden_size, output_size)

    # One-time padding/packing of parameters (done at init, not per call).
    w1_pad, bias_pack, w2_pad, out_dim = pack_params(w1, b1, w2, b2)

    out = linear_qnet_forward(x, w1_pad, bias_pack, w2_pad, out_dim)
    jax.block_until_ready(out)

    # Pure-JAX reference check (same semantics as the PyTorch forward).
    ref = jnp.maximum(x @ w1 + b1, 0.0) @ w2 + b2
    assert out.shape == (B, output_size)
    assert jnp.allclose(out, ref, atol=1e-5, rtol=1e-5)

    print("KERNEL_OK")
</pallas_src>

<mosaic_0001>
module attributes {stable_mosaic.version = 11 : i64} {
  func.func @_qnet_kernel(%arg0: memref<8x16xf32, #tpu.memory_space<vmem>>, %arg1: memref<16x128xf32, #tpu.memory_space<vmem>>, %arg2: memref<2x128xf32, #tpu.memory_space<vmem>>, %arg3: memref<128x128xf32, #tpu.memory_space<vmem>>, %arg4: memref<8x128xf32, #tpu.memory_space<vmem>>) attributes {dimension_semantics = [], scalar_prefetch = 0 : i64, scratch_operands = 0 : i64, tpu.core_type = #tpu.core_type<tc>} {
    %c0 = arith.constant 0 : index
    %c0_0 = arith.constant 0 : index
    %0 = vector.load %arg0[%c0, %c0_0] : memref<8x16xf32, #tpu.memory_space<vmem>>, vector<8x16xf32>
    %c0_1 = arith.constant 0 : index
    %c0_2 = arith.constant 0 : index
    %1 = vector.load %arg1[%c0_1, %c0_2] : memref<16x128xf32, #tpu.memory_space<vmem>>, vector<16x128xf32>
    %cst = arith.constant dense<0.000000e+00> : vector<8x128xf32>
    %2 = tpu.matmul %0, %1, %cst {dimension_numbers = #tpu.dot_dimension_numbers<[1], [0], [0], [1], [0, 0, 1, 1], [], []>} : vector<8x16xf32>, vector<16x128xf32>, vector<8x128xf32> -> vector<8x128xf32>
    %c0_3 = arith.constant 0 : index
    %c0_4 = arith.constant 0 : index
    %3 = vector.load %arg2[%c0_3, %c0_4] : memref<2x128xf32, #tpu.memory_space<vmem>>, vector<1x128xf32>
    %4 = vector.broadcast %3 : vector<1x128xf32> to vector<8x128xf32>
    %5 = arith.addf %2, %4 : vector<8x128xf32>
    %cst_5 = arith.constant 0.000000e+00 : f32
    %6 = vector.broadcast %cst_5 : f32 to vector<8x128xf32>
    %7 = arith.maximumf %5, %6 : vector<8x128xf32>
    %c0_6 = arith.constant 0 : index
    %c0_7 = arith.constant 0 : index
    %8 = vector.load %arg3[%c0_6, %c0_7] : memref<128x128xf32, #tpu.memory_space<vmem>>, vector<128x128xf32>
    %cst_8 = arith.constant dense<0.000000e+00> : vector<8x128xf32>
    %9 = tpu.matmul %7, %8, %cst_8 {dimension_numbers = #tpu.dot_dimension_numbers<[1], [0], [0], [1], [0, 0, 1, 1], [], []>} : vector<8x128xf32>, vector<128x128xf32>, vector<8x128xf32> -> vector<8x128xf32>
    %c1 = arith.constant 1 : index
    %c0_9 = arith.constant 0 : index
    %10 = vector.load %arg2[%c1, %c0_9] : memref<2x128xf32, #tpu.memory_space<vmem>>, vector<1x128xf32>
    %11 = vector.broadcast %10 : vector<1x128xf32> to vector<8x128xf32>
    %12 = arith.addf %9, %11 : vector<8x128xf32>
    %c0_10 = arith.constant 0 : index
    %c0_11 = arith.constant 0 : index
    %13 = vector.load %arg4[%c0_10, %c0_11] : memref<8x128xf32, #tpu.memory_space<vmem>>, vector<8x128xf32>
    tpu.vector_store %arg4[%c0_10, %c0_11], %12 {strides = array<i32>} : memref<8x128xf32, #tpu.memory_space<vmem>>, vector<8x128xf32>,
    return
  }
}

</mosaic_0001>

<llo_original>
// kernel: linear_qnet_forward.1
$region0: #{linear_qnet_forward.1}
  #allocation0 [shape = 'u32[]', space=smem, size = 0x4, offset = 0x4, fixed_abs, tag = 'smem constant byte address 0x4 - core index']
  #allocation1 [shape = 'u32[144,128]{1,0:T(1,128)}', space=vmem, size = 0x12000, scoped, tag = 'internal scratch']
  %s0 = inlined_call_operand.hbm [shape: f32[8,16], index: 0, kind: input, shape index: {}]
  %s1 = inlined_call_operand.hbm [shape: f32[16,128], index: 1, kind: input, shape index: {}]
  %s2 = inlined_call_operand.vmem [shape: f32[2,128], index: 2, kind: input, shape index: {}]
  %s3 = inlined_call_operand.hbm [shape: f32[128,128], index: 3, kind: input, shape index: {}]
  %s4 = inlined_call_operand.vmem [shape: f32[8,128], index: 4, kind: output, shape index: {}]
  %s5 = sld [smem:[#allocation0]]
  $region38: #{linear_qnet_forward.1} parent=0
    _
  %s7 = ssub.s32 1, %s5
  %s8 = scalar_select 0, %s7, %s5
  $region1: #{linear_qnet_forward.1} parent=0
    #allocation2 [shape = 'u8[4096]{0}', space=vmem, size = 0x1000, scoped, tag = 'input window, operand 0, single buffered']
    #allocation3 [shape = 's32[1]{0}', space=sflag, size = 0x4, scoped, tag = 'scoped memory for linear_qnet_forward.1']
    #allocation4 [shape = 'u8[8192]{0}', space=vmem, size = 0x2000, scoped, tag = 'input window, operand 1, single buffered']
    #allocation5 [shape = 's32[1]{0}', space=sflag, size = 0x4, scoped, tag = 'scoped memory for linear_qnet_forward.1']
    #allocation6 [shape = 'u8[65536]{0}', space=vmem, size = 0x10000, scoped, tag = 'input window, operand 3, single buffered']
    %9 = vsyncpa [#allocation3], 0
    %10 = vsyncpa [#allocation5], 0
    // Predicated region
    $region2: #{linear_qnet_forward.1} parent=1 // pred_check
      _
    $region3: #{linear_qnet_forward.1} parent=1 // pred_check_branch
      %12 = sbr.rel (0) target = $region5
    $region4: #{linear_qnet_forward.1} parent=1 // pred_region
      %s14 = ssub.s32 128, 128
      %15 = vsyncadd [#allocation3], %s14
      %s17 = sshll.u32 [#allocation2], 4
      %s18 = int_to_ptr.vmem [resolvable:$true] %s17
      %20 = dma.hbm_to_vmem [thread:$0]  %s0, 128, %s18, [#allocation3]
    $region5: #{linear_qnet_forward.1} parent=1 // pred_fallthru
      _
    // Predicated region
    $region6: #{linear_qnet_forward.1} parent=1 // pred_check
      _
    $region7: #{linear_qnet_forward.1} parent=1 // pred_check_branch
      %22 = sbr.rel (0) target = $region9
    $region8: #{linear_qnet_forward.1} parent=1 // pred_region
      %s24 = ssub.s32 256, 256
      %25 = vsyncadd [#allocation5], %s24
      %s26 = sshll.u32 [#allocation4], 4
      %s27 = int_to_ptr.vmem [resolvable:$true] %s26
      %32 = dma.hbm_to_vmem [thread:$0]  %s1, 256, %s27, [#allocation5], 128, 128, 8
    $region9: #{linear_qnet_forward.1} parent=1 // pred_fallthru
      _
    // Predicated region
    $region10: #{linear_qnet_forward.1} parent=1 // pred_check
      _
    $region11: #{linear_qnet_forward.1} parent=1 // pred_check_branch
      %34 = sbr.rel (0) target = $region13
    $region12: #{linear_qnet_forward.1} parent=1 // pred_region
      _
    $region13: #{linear_qnet_forward.1} parent=1 // pred_fallthru
      _
    // Predicated region
    $region14: #{linear_qnet_forward.1} parent=1 // pred_check
      _
    $region15: #{linear_qnet_forward.1} parent=1 // pred_check_branch
      %36 = sbr.rel (0) target = $region17
    $region16: #{linear_qnet_forward.1} parent=1 // pred_region
      %s38 = ssub.s32 2048, 2048
      %39 = vsyncadd [#allocation5], %s38
      %s40 = sshll.u32 [#allocation6], 4
      %s41 = int_to_ptr.vmem [resolvable:$true] %s40
      %46 = dma.hbm_to_vmem [thread:$0]  %s3, 2048, %s41, [#allocation5], 128, 128, 8
    $region17: #{linear_qnet_forward.1} parent=1 // pred_fallthru
      _
    // Predicated region
    $region18: #{linear_qnet_forward.1} parent=1 // pred_check
      _
    $region19: #{linear_qnet_forward.1} parent=1 // pred_check_branch
      %48 = sbr.rel (0) target = $region21
    $region20: #{linear_qnet_forward.1} parent=1 // pred_region
      %49 = dma.done [#allocation3], 128
    $region21: #{linear_qnet_forward.1} parent=1 // pred_fallthru
      _
    // Predicated region
    $region22: #{linear_qnet_forward.1} parent=1 // pred_check
      _
    $region23: #{linear_qnet_forward.1} parent=1 // pred_check_branch
      %51 = sbr.rel (0) target = $region25
    $region24: #{linear_qnet_forward.1} parent=1 // pred_region
      %52 = dma.done [#allocation5], 256
    $region25: #{linear_qnet_forward.1} parent=1 // pred_fallthru
      _
    // Predicated region
    $region26: #{linear_qnet_forward.1} parent=1 // pred_check
      _
    $region27: #{linear_qnet_forward.1} parent=1 // pred_check_branch
      %54 = sbr.rel (0) target = $region29
    $region28: #{linear_qnet_forward.1} parent=1 // pred_region
      %55 = dma.done [#allocation5], 2048
    $region29: #{linear_qnet_forward.1} parent=1 // pred_fallthru
      _
    %v56 = vld [vmem:[#allocation2] sm:$0xff]
    %v57 = vld [vmem:[#allocation4] sm:$0xff]
    %v58 = vld [vmem:[#allocation4 + $0x8] sm:$0xff]
    %v59 = vld [vmem:[%s2] sm:$0x1]
    %v60 = vlaneseq
    %v61 = vshrl.u32 %v60, 7
    %v62 = vsub.s32 0, %v61
    %v63 = vrot.slane %v59, %v62
    %vm64 = vcmask 130048
    %v66 = vsel %vm64, %v56, 0
    %68 = vmatprep.subr.mxu0 0.0
    %69 = vmatpush1.msra.mxu0 0.0
    %70 = vmatprep.subr.mxu0 0.0
    %71 = vmatpush1.msra.mxu0 0.0
    %72 = vmatprep.subr.mxu0 0.0
    %73 = vmatpush1.msra.mxu0 0.0
    %74 = vmatprep.subr.mxu0 0.0
    %75 = vmatpush1.msra.mxu0 0.0
    %76 = vmatprep.subr.mxu0 0.0
    %77 = vmatpush1.msra.mxu0 0.0
    %78 = vmatprep.subr.mxu0 0.0
    %79 = vmatpush1.msra.mxu0 0.0
    %80 = vmatprep.subr.mxu0 0.0
    %81 = vmatpush1.msra.mxu0 0.0
    %82 = vmatprep.subr.mxu0 0.0
    %83 = vmatpush1.msra.mxu0 0.0
    %84 = vmatprep.subr.mxu0 0.0
    %85 = vmatpush1.msra.mxu0 0.0
    %86 = vmatprep.subr.mxu0 0.0
    %87 = vmatpush1.msra.mxu0 0.0
    %88 = vmatprep.subr.mxu0 0.0
    %89 = vmatpush1.msra.mxu0 0.0
    %90 = vmatprep.subr.mxu0 0.0
    %91 = vmatpush1.msra.mxu0 0.0
    %92 = vmatprep.subr.mxu0 0.0
    %93 = vmatpush1.msra.mxu0 0.0
    %94 = vmatprep.subr.mxu0 0.0
    %95 = vmatpush1.msra.mxu0 0.0
    %96 = vmatprep.subr.mxu0 0.0
    %97 = vmatpush1.msra.mxu0 %v58
    %98 = vmatprep.subr.mxu0 0.0
    %99 = vmatpush1.msra.mxu0 %v57
    %100 = vmatprep.subr.mxu0 0.0
    %101 = vmatpush2.msra.mxu0 0.0
    %102 = vmatprep.subr.mxu0 0.0
    %103 = vmatpush2.msra.mxu0 0.0
    %104 = vmatprep.subr.mxu0 0.0
    %105 = vmatpush2.msra.mxu0 0.0
    %106 = vmatprep.subr.mxu0 0.0
    %107 = vmatpush2.msra.mxu0 0.0
    %108 = vmatprep.subr.mxu0 0.0
    %109 = vmatpush2.msra.mxu0 0.0
    %110 = vmatprep.subr.mxu0 0.0
    %111 = vmatpush2.msra.mxu0 0.0
    %112 = vmatprep.subr.mxu0 0.0
    %113 = vmatpush2.msra.mxu0 0.0
    %114 = vmatprep.subr.mxu0 0.0
    %115 = vmatpush2.msra.mxu0 0.0
    %116 = vmatprep.subr.mxu0 0.0
    %117 = vmatpush2.msra.mxu0 0.0
    %118 = vmatprep.subr.mxu0 0.0
    %119 = vmatpush2.msra.mxu0 0.0
    %120 = vmatprep.subr.mxu0 0.0
    %121 = vmatpush2.msra.mxu0 0.0
    %122 = vmatprep.subr.mxu0 0.0
    %123 = vmatpush2.msra.mxu0 0.0
    %124 = vmatprep.subr.mxu0 0.0
    %125 = vmatpush2.msra.mxu0 0.0
    %126 = vmatprep.subr.mxu0 0.0
    %127 = vmatpush2.msra.mxu0 0.0
    %128 = vmatprep.subr.mxu0 0.0
    %129 = vmatpush2.msra.mxu0 0.0
    %130 = vmatprep.subr.mxu0 0.0
    %131 = vmatpush2.msra.mxu0 0.0
    %132 = vmatprep.mubr.f32.mxu0 0.0
    %133 = vmatmul.mubr.f32.gmra.mxu0 %v66
    %v134 = vpop.f32.mrf.mxu0
    %v135 = vadd.f32 %v63, %v134
    %v136 = vpop.f32.mrf.mxu0
    %137 = vdwg.mxu0
    %v138 = vmax.f32 %v135, 0.0
    %v139 = vld [vmem:[#allocation6] sm:$0xff]
    %v140 = vld [vmem:[#allocation6 + $0x8] sm:$0xff]
    %v141 = vld [vmem:[#allocation6 + $0x10] sm:$0xff]
    %v142 = vld [vmem:[#allocation6 + $0x18] sm:$0xff]
    %v143 = vld [vmem:[#allocation6 + $0x20] sm:$0xff]
    %v144 = vld [vmem:[#allocation6 + $0x28] sm:$0xff]
    %v145 = vld [vmem:[#allocation6 + $0x30] sm:$0xff]
    %v146 = vld [vmem:[#allocation6 + $0x38] sm:$0xff]
    %v147 = vld [vmem:[#allocation6 + $0x40] sm:$0xff]
    %v148 = vld [vmem:[#allocation6 + $0x48] sm:$0xff]
    %v149 = vld [vmem:[#allocation6 + $0x50] sm:$0xff]
    %v150 = vld [vmem:[#allocation6 + $0x58] sm:$0xff]
    %v151 = vld [vmem:[#allocation6 + $0x60] sm:$0xff]
    %v152 = vld [vmem:[#allocation6 + $0x68] sm:$0xff]
    %v153 = vld [vmem:[#allocation6 + $0x70] sm:$0xff]
    %v154 = vld [vmem:[#allocation6 + $0x78] sm:$0xff]
    %v155 = vld [vmem:[%s2 + $0x1] sm:$0x1]
    %v156 = vlaneseq
    %v157 = vshrl.u32 %v156, 7
    %v158 = vsub.s32 0, %v157
    %v159 = vrot.slane %v155, %v158
    %160 = vmatprep.subr.mxu0 0.0
    %161 = vmatpush1.msra.mxu0 %v154
    %162 = vmatprep.subr.mxu0 0.0
    %163 = vmatpush1.msra.mxu0 %v153
    %164 = vmatprep.subr.mxu0 0.0
    %165 = vmatpush1.msra.mxu0 %v152
    %166 = vmatprep.subr.mxu0 0.0
    %167 = vmatpush1.msra.mxu0 %v151
    %168 = vmatprep.subr.mxu0 0.0
    %169 = vmatpush1.msra.mxu0 %v150
    %170 = vmatprep.subr.mxu0 0.0
    %171 = vmatpush1.msra.mxu0 %v149
    %172 = vmatprep.subr.mxu0 0.0
    %173 = vmatpush1.msra.mxu0 %v148
    %174 = vmatprep.subr.mxu0 0.0
    %175 = vmatpush1.msra.mxu0 %v147
    %176 = vmatprep.subr.mxu0 0.0
    %177 = vmatpush1.msra.mxu0 %v146
    %178 = vmatprep.subr.mxu0 0.0
    %179 = vmatpush1.msra.mxu0 %v145
    %180 = vmatprep.subr.mxu0 0.0
    %181 = vmatpush1.msra.mxu0 %v144
    %182 = vmatprep.subr.mxu0 0.0
    %183 = vmatpush1.msra.mxu0 %v143
    %184 = vmatprep.subr.mxu0 0.0
    %185 = vmatpush1.msra.mxu0 %v142
    %186 = vmatprep.subr.mxu0 0.0
    %187 = vmatpush1.msra.mxu0 %v141
    %188 = vmatprep.subr.mxu0 0.0
    %189 = vmatpush1.msra.mxu0 %v140
    %190 = vmatprep.subr.mxu0 0.0
    %191 = vmatpush1.msra.mxu0 %v139
    %192 = vmatprep.subr.mxu0 0.0
    %193 = vmatpush2.msra.mxu0 0.0
    %194 = vmatprep.subr.mxu0 0.0
    %195 = vmatpush2.msra.mxu0 0.0
    %196 = vmatprep.subr.mxu0 0.0
    %197 = vmatpush2.msra.mxu0 0.0
    %198 = vmatprep.subr.mxu0 0.0
    %199 = vmatpush2.msra.mxu0 0.0
    %200 = vmatprep.subr.mxu0 0.0
    %201 = vmatpush2.msra.mxu0 0.0
    %202 = vmatprep.subr.mxu0 0.0
    %203 = vmatpush2.msra.mxu0 0.0
    %204 = vmatprep.subr.mxu0 0.0
    %205 = vmatpush2.msra.mxu0 0.0
    %206 = vmatprep.subr.mxu0 0.0
    %207 = vmatpush2.msra.mxu0 0.0
    %208 = vmatprep.subr.mxu0 0.0
    %209 = vmatpush2.msra.mxu0 0.0
    %210 = vmatprep.subr.mxu0 0.0
    %211 = vmatpush2.msra.mxu0 0.0
    %212 = vmatprep.subr.mxu0 0.0
    %213 = vmatpush2.msra.mxu0 0.0
    %214 = vmatprep.subr.mxu0 0.0
    %215 = vmatpush2.msra.mxu0 0.0
    %216 = vmatprep.subr.mxu0 0.0
    %217 = vmatpush2.msra.mxu0 0.0
    %218 = vmatprep.subr.mxu0 0.0
    %219 = vmatpush2.msra.mxu0 0.0
    %220 = vmatprep.subr.mxu0 0.0
    %221 = vmatpush2.msra.mxu0 0.0
    %222 = vmatprep.subr.mxu0 0.0
    %223 = vmatpush2.msra.mxu0 0.0
    %224 = vmatprep.mubr.f32.mxu0 0.0
    %225 = vmatmul.mubr.f32.gmra.mxu0 %v138
    %v226 = vpop.f32.mrf.mxu0
    %v227 = vadd.f32 %v159, %v226
    %v228 = vpop.f32.mrf.mxu0
    %229 = vdwg.mxu0
    %230 = vst [vmem:[%s4] sm:$0xff] %v227
    // Predicated region
    $region30: #{linear_qnet_forward.1} parent=1 // pred_check
      _
    $region31: #{linear_qnet_forward.1} parent=1 // pred_check_branch
      %232 = sbr.rel (0) target = $region33
    $region32: #{linear_qnet_forward.1} parent=1 // pred_region
      _
    $region33: #{linear_qnet_forward.1} parent=1 // pred_fallthru
      _
    // Predicated region
    $region34: #{linear_qnet_forward.1} parent=1 // pred_check
      _
    $region35: #{linear_qnet_forward.1} parent=1 // pred_check_branch
      %234 = sbr.rel (0) target = $region37
    $region36: #{linear_qnet_forward.1} parent=1 // pred_region
      _
    $region37: #{linear_qnet_forward.1} parent=1 // pred_fallthru
      _
    %235 = vsyncpa [#allocation3], 1
    %236 = vsyncpa [#allocation5], 1

</llo_original>
